<compile_context>
chip_gen: v7x
topology: tpu7x:2x2x1
jax: 0.10.0
libtpu: 0.0.40
codegen_flags: <defaults>
</compile_context>

<pallas_src>
import functools

import jax
import jax.numpy as jnp
from jax.experimental import pallas as pl
from jax.experimental.pallas import tpu as pltpu


def _round_up(v, m):
    return (v + m - 1) // m * m


def _vmem_cap_bytes():
    # ~80% of per-core VMEM; conservative 64 MiB (v7x) default if the query is
    # unavailable (e.g. CPU interpret mode).
    try:
        cap = int(pltpu.get_tpu_info().vmem_capacity_bytes)
    except Exception:
        cap = 64 << 20
    return (cap * 4) // 5


def _clamp_vmem(estimate, cap):
    return int(min(max(int(estimate), 32 << 20), cap))


# ---------------------------------------------------------------------------
# Single-pass kernel: one batch element == one whole (C, HW) VMEM tile.
# ---------------------------------------------------------------------------
def _channel_attention_kernel(beta_ref, x_ref, o_ref, *, mxu_dtype):
    a = x_ref[0]                                     # (C, HW), native dtype
    am = a.astype(mxu_dtype)                         # MXU operand (bf16 for f32)

    # Channel Gram without transposing the big tile:
    #   att[i, j] = sum_hw am[i, hw] * am[j, hw]     (MXU, f32 accumulation)
    att = jax.lax.dot_general(
        am, am, (((1,), (1,)), ((), ())),
        preferred_element_type=jnp.float32)          # (C, C) f32

    # softmax(rowmax - att) == softmax(-att); its stabilized logits are
    # (rowmin - att) <= 0, so a single row-min reduction suffices.
    row_min = jnp.min(att, axis=-1, keepdims=True)   # (C, 1)
    e = jnp.exp(row_min - att)
    denom = jnp.sum(e, axis=-1, keepdims=True)       # >= 1
    # Exact reciprocal: denom is only (C, 1), approx=True buys nothing here.
    p = e * pl.reciprocal(denom, approx=False)

    feat = jnp.dot(p.astype(mxu_dtype), am,
                   preferred_element_type=jnp.float32)   # (C, HW) f32

    # Fused epilogue: no f32 residual temp of the (C, HW) tile.
    o_ref[0] = (beta_ref[0] * feat).astype(o_ref.dtype) + a


# ---------------------------------------------------------------------------
# Two-pass fallback for VMEM-constrained shapes (v7x).
# ---------------------------------------------------------------------------
def _gram_softmax_kernel(x_ref, p_ref, acc_ref, *, mxu_dtype):
    t = pl.program_id(1)

    @pl.when(t == 0)
    def _init():
        acc_ref[...] = jnp.zeros_like(acc_ref)

    am = x_ref[0].astype(mxu_dtype)                  # (C, hw_t)
    acc_ref[...] += jax.lax.dot_general(
        am, am, (((1,), (1,)), ((), ())),
        preferred_element_type=jnp.float32)

    @pl.when(t == pl.num_programs(1) - 1)
    def _finalize():
        att = acc_ref[...]
        row_min = jnp.min(att, axis=-1, keepdims=True)
        e = jnp.exp(row_min - att)
        denom = jnp.sum(e, axis=-1, keepdims=True)
        p = e * pl.reciprocal(denom, approx=False)
        p_ref[0] = p.astype(p_ref.dtype)


def _apply_kernel(beta_ref, p_ref, x_ref, o_ref, *, mxu_dtype):
    a = x_ref[0]                                     # (C, hw_t)
    feat = jnp.dot(p_ref[0], a.astype(mxu_dtype),
                   preferred_element_type=jnp.float32)
    o_ref[0] = (beta_ref[0] * feat).astype(o_ref.dtype) + a


def _channel_attention_multipass(xr, beta32, mxu_dtype, hw_tile, vmem_cap):
    B, C, HW = xr.shape
    itemsize = jnp.dtype(xr.dtype).itemsize
    mxu_itemsize = jnp.dtype(mxu_dtype).itemsize

    hw_t = _round_up(max(128, min(int(hw_tile), _round_up(HW, 128))), 128)
    HWp = _round_up(HW, hw_t)
    if HWp != HW:
        # TODO(synk): replace this pad + final slice (extra HBM round trip)
        # with in-kernel masking of the ragged last HW tile.
        xr = jnp.pad(xr, ((0, 0), (0, 0), (0, HWp - HW)))
    n_hw = HWp // hw_t

    # Pass 1: accumulate the (C, C) Gram over HW tiles, emit softmax probs.
    # TODO(synk): for C so large that (C, C) f32 does not fit in VMEM this
    # needs an additional C-tiled structure.
    k1_vmem = _clamp_vmem(
        2 * C * hw_t * itemsize + 2 * C * C * mxu_itemsize
        + 4 * C * C * 4 + C * hw_t * mxu_itemsize + (2 << 20), vmem_cap)
    p = pl.pallas_call(
        functools.partial(_gram_softmax_kernel, mxu_dtype=mxu_dtype),
        out_shape=jax.ShapeDtypeStruct((B, C, C), mxu_dtype),
        grid_spec=pltpu.PrefetchScalarGridSpec(
            num_scalar_prefetch=0,
            grid=(B, n_hw),
            in_specs=[pl.BlockSpec((1, C, hw_t), lambda b, t: (b, 0, t))],
            out_specs=pl.BlockSpec((1, C, C), lambda b, t: (b, 0, 0)),
            scratch_shapes=[pltpu.VMEM((C, C), jnp.float32)]),
        compiler_params=pltpu.CompilerParams(
            dimension_semantics=("parallel", "arbitrary"),
            vmem_limit_bytes=k1_vmem),
    )(xr)

    # Pass 2: stream HW tiles for p @ feat_a plus the residual.
    k2_vmem = _clamp_vmem(
        4 * C * hw_t * itemsize + 2 * C * C * mxu_itemsize
        + C * hw_t * (4 + mxu_itemsize) + (2 << 20), vmem_cap)
    out = pl.pallas_call(
        functools.partial(_apply_kernel, mxu_dtype=mxu_dtype),
        out_shape=jax.ShapeDtypeStruct((B, C, HWp), xr.dtype),
        grid_spec=pltpu.PrefetchScalarGridSpec(
            num_scalar_prefetch=0,
            grid=(B, n_hw),
            in_specs=[
                pl.BlockSpec(memory_space=pltpu.MemorySpace.SMEM),    # beta
                pl.BlockSpec((1, C, C), lambda b, t: (b, 0, 0)),      # p
                pl.BlockSpec((1, C, hw_t), lambda b, t: (b, 0, t)),   # x tile
            ],
            out_specs=pl.BlockSpec((1, C, hw_t), lambda b, t: (b, 0, t))),
        compiler_params=pltpu.CompilerParams(
            dimension_semantics=("parallel", "parallel"),
            vmem_limit_bytes=k2_vmem),
    )(beta32, p, xr)

    return out[:, :, :HW] if HWp != HW else out


# ---------------------------------------------------------------------------
# Public wrapper.
# ---------------------------------------------------------------------------
def channel_attention(x, beta, *, hw_tile=512, mxu_dtype=None,
                      force_multipass=False):
    """Forward pass of _ChannelAttentionModule. x: (B, C, H, W), beta: (1,)."""
    B, C, H, W = x.shape
    HW = H * W
    if mxu_dtype is None:
        # f32 matmuls crawl on the MXU; bf16 operands + f32 accumulation is
        # the standard TPU trade-off. Narrower inputs keep their own dtype.
        mxu_dtype = jnp.bfloat16 if x.dtype == jnp.dtype(jnp.float32) else x.dtype

    xr = x.reshape(B, C, HW)                       # layout no-op
    beta32 = jnp.asarray(beta).reshape((1,)).astype(jnp.float32)

    itemsize = jnp.dtype(x.dtype).itemsize
    mxu_itemsize = jnp.dtype(mxu_dtype).itemsize
    vmem_cap = _vmem_cap_bytes()

    # Live VMEM of the single-pass path: double-buffered in/out blocks plus the
    # bf16 operand copy, the f32 feat tile and the (C, C) f32 temps + margin.
    single_pass_bytes = (4 * C * HW * itemsize
                         + C * HW * (mxu_itemsize + 4)
                         + 16 * C * C + (2 << 20))

    if force_multipass or single_pass_bytes > vmem_cap:
        out = _channel_attention_multipass(xr, beta32, mxu_dtype, hw_tile,
                                           vmem_cap)
        return out.reshape(B, C, H, W)

    out = pl.pallas_call(
        functools.partial(_channel_attention_kernel, mxu_dtype=mxu_dtype),
        out_shape=jax.ShapeDtypeStruct((B, C, HW), x.dtype),
        grid_spec=pltpu.PrefetchScalarGridSpec(
            num_scalar_prefetch=0,
            grid=(B,),
            in_specs=[
                pl.BlockSpec(memory_space=pltpu.MemorySpace.SMEM),   # beta (1,)
                pl.BlockSpec((1, C, HW), lambda b: (b, 0, 0)),       # x, full tile
            ],
            out_specs=pl.BlockSpec((1, C, HW), lambda b: (b, 0, 0))),
        compiler_params=pltpu.CompilerParams(
            dimension_semantics=("parallel",),
            vmem_limit_bytes=_clamp_vmem(single_pass_bytes, vmem_cap)),
    )(beta32, xr)
    return out.reshape(B, C, H, W)


# ---------------------------------------------------------------------------
# Self-check.
# ---------------------------------------------------------------------------
def _reference(x, beta, mxu_dtype=jnp.bfloat16):
    """Pure-JAX reference using the same MXU operand precision as the kernel."""
    B, C, H, W = x.shape
    a = x.reshape(B, C, H * W).astype(jnp.float32)
    am = a.astype(mxu_dtype)
    att = jnp.einsum("bcn,bdn->bcd", am, am,
                     preferred_element_type=jnp.float32)
    att_new = jnp.max(att, axis=-1, keepdims=True) - att
    p = jax.nn.softmax(att_new, axis=-1)
    feat = jnp.einsum("bcd,bdn->bcn", p.astype(mxu_dtype), am,
                      preferred_element_type=jnp.float32)
    out = beta[0] * feat + a
    return out.reshape(B, C, H, W).astype(x.dtype)


if __name__ == "__main__":
    key = jax.random.PRNGKey(0)
    B, C, H, W = 2, 4, 16, 16
    x = jax.random.normal(key, (B, C, H, W), dtype=jnp.float32)

    # Parameter init exactly as in the module: beta = zeros(1) => identity.
    beta0 = jnp.zeros((1,), dtype=jnp.float32)
    out0 = jax.block_until_ready(channel_attention(x, beta0))
    assert out0.shape == (B, C, H, W)
    assert jnp.allclose(out0, x, atol=1e-6, rtol=1e-6)

    # Non-trivial beta exercises the attention path on both kernel paths.
    beta1 = jnp.array([0.75], dtype=jnp.float32)
    ref1 = _reference(x, beta1)

    out1 = jax.block_until_ready(channel_attention(x, beta1))
    assert jnp.all(jnp.isfinite(out1))
    assert jnp.allclose(out1, ref1, atol=5e-3, rtol=5e-3), (
        float(jnp.max(jnp.abs(out1 - ref1))))

    out1_mp = jax.block_until_ready(
        channel_attention(x, beta1, force_multipass=True, hw_tile=128))
    assert jnp.all(jnp.isfinite(out1_mp))
    assert jnp.allclose(out1_mp, ref1, atol=5e-3, rtol=5e-3), (
        float(jnp.max(jnp.abs(out1_mp - ref1))))

    print("KERNEL_OK")
</pallas_src>

<mosaic_0001>
module attributes {stable_mosaic.version = 11 : i64} {
  func.func @_channel_attention_kernel(%arg0: i32, %arg1: memref<1xf32, #tpu.memory_space<smem>>, %arg2: memref<1x4x256xf32, #tpu.memory_space<vmem>>, %arg3: memref<1x4x256xf32, #tpu.memory_space<vmem>>) attributes {dimension_semantics = [#tpu.dimension_semantics<parallel>], iteration_bounds = array<i64: 2>, scalar_prefetch = 0 : i64, scratch_operands = 0 : i64, tpu.core_type = #tpu.core_type<tc>, window_params = [{transform_indices = @transform_0, window_bounds = array<i64: 1>}, {transform_indices = @transform_1, window_bounds = array<i64: 1, 4, 256>}, {transform_indices = @transform_2, window_bounds = array<i64: 1, 4, 256>}]} {
    %c0 = arith.constant 0 : index
    %c0_0 = arith.constant 0 : index
    %c0_1 = arith.constant 0 : index
    %0 = vector.load %arg2[%c0, %c0_0, %c0_1] : memref<1x4x256xf32, #tpu.memory_space<vmem>>, vector<1x4x256xf32>
    %1 = vector.shape_cast %0 : vector<1x4x256xf32> to vector<4x256xf32>
    %2 = arith.truncf %1 : vector<4x256xf32> to vector<4x256xbf16>
    %cst = arith.constant dense<0.000000e+00> : vector<4x4xf32>
    %3 = tpu.matmul %2, %2, %cst {dimension_numbers = #tpu.dot_dimension_numbers<[1], [1], [0], [0], [0, 0, 1, 0], [], []>} : vector<4x256xbf16>, vector<4x256xbf16>, vector<4x4xf32> -> vector<4x4xf32>
    %cst_2 = arith.constant dense<0x7F800000> : vector<4xf32>
    %4 = vector.multi_reduction <minimumf>, %3, %cst_2 [1] : vector<4x4xf32> to vector<4xf32>
    %5 = vector.shape_cast %4 : vector<4xf32> to vector<4x1xf32>
    %6 = vector.broadcast %5 : vector<4x1xf32> to vector<4x4xf32>
    %7 = arith.subf %6, %3 : vector<4x4xf32>
    %8 = math.exp %7 : vector<4x4xf32>
    %cst_3 = arith.constant dense<0.000000e+00> : vector<4xf32>
    %9 = vector.multi_reduction <add>, %8, %cst_3 [1] : vector<4x4xf32> to vector<4xf32>
    %10 = vector.shape_cast %9 : vector<4xf32> to vector<4x1xf32>
    %11 = tpu.reciprocal %10 : vector<4x1xf32> -> vector<4x1xf32>
    %12 = vector.broadcast %11 : vector<4x1xf32> to vector<4x4xf32>
    %13 = arith.mulf %8, %12 : vector<4x4xf32>
    %14 = arith.truncf %13 : vector<4x4xf32> to vector<4x4xbf16>
    %cst_4 = arith.constant dense<0.000000e+00> : vector<4x256xf32>
    %15 = tpu.matmul %14, %2, %cst_4 {dimension_numbers = #tpu.dot_dimension_numbers<[1], [0], [0], [1], [0, 0, 1, 1], [], []>} : vector<4x4xbf16>, vector<4x256xbf16>, vector<4x256xf32> -> vector<4x256xf32>
    %c0_5 = arith.constant 0 : index
    %16 = memref.load %arg1[%c0_5] : memref<1xf32, #tpu.memory_space<smem>>
    %17 = vector.broadcast %16 : f32 to vector<4x256xf32>
    %18 = arith.mulf %17, %15 : vector<4x256xf32>
    %19 = arith.addf %18, %1 : vector<4x256xf32>
    %c0_6 = arith.constant 0 : index
    %c0_7 = arith.constant 0 : index
    %c0_8 = arith.constant 0 : index
    %20 = vector.load %arg3[%c0_6, %c0_7, %c0_8] : memref<1x4x256xf32, #tpu.memory_space<vmem>>, vector<1x4x256xf32>
    %21 = vector.shape_cast %20 : vector<1x4x256xf32> to vector<4x256xf32>
    %22 = vector.shape_cast %19 : vector<4x256xf32> to vector<1x4x256xf32>
    tpu.vector_store %arg3[%c0_6, %c0_7, %c0_8], %22 {strides = array<i32>} : memref<1x4x256xf32, #tpu.memory_space<vmem>>, vector<1x4x256xf32>,
    return
  }
  func.func @transform_0(%arg0: i32) -> i32 {
    %c0_i32 = arith.constant 0 : i32
    %c0_i32_0 = arith.constant 0 : i32
    return %c0_i32 : i32
  }
  func.func @transform_1(%arg0: i32) -> (i32, i32, i32) {
    %c0_i32 = arith.constant 0 : i32
    %c0_i32_0 = arith.constant 0 : i32
    %c0_i32_1 = arith.constant 0 : i32
    return %arg0, %c0_i32, %c0_i32_0 : i32, i32, i32
  }
  func.func @transform_2(%arg0: i32) -> (i32, i32, i32) {
    %c0_i32 = arith.constant 0 : i32
    %c0_i32_0 = arith.constant 0 : i32
    %c0_i32_1 = arith.constant 0 : i32
    return %arg0, %c0_i32, %c0_i32_0 : i32, i32, i32
  }
}

</mosaic_0001>

<llo_original>
// kernel: tpu_custom_call.1
$region0: #{tpu_custom_call.1}
  #allocation0 [shape = 'u32[]', space=smem, size = 0x4, offset = 0x4, fixed_abs, tag = 'smem constant byte address 0x4 - core index']
  #allocation1 [shape = 'u32[144,128]{1,0:T(1,128)}', space=vmem, size = 0x12000, scoped, tag = 'internal scratch']
  #allocation2 [shape = 'f32[1]{0:T(128)S(6)}', space=smem, size = 0x200, scoped, tag = 'scoped memory for tpu_custom_call.1']
  %s0 = inlined_call_operand.<no memory space> [shape: f32[1], index: 0, kind: input, shape index: {}]
  %s1 = inlined_call_operand.hbm [shape: f32[2,4,256], index: 1, kind: input, shape index: {}]
  %s2 = inlined_call_operand.hbm [shape: f32[2,4,256], index: 2, kind: output, shape index: {}]
  %s3 = sld [smem:[#allocation0]]
  $region45: #{tpu_custom_call.1} parent=0
    _
  %s5 = ssub.s32 1, %s3
  %s6 = scalar_select 0, %s5, %s3
  %7 = sst [smem:[#allocation2]] %s0
  $region1: #{tpu_custom_call.1} parent=0
    #allocation3 [shape = 'u8[8192]{0}', space=vmem, size = 0x2000, scoped, tag = 'input window, operand 1']
    #allocation4 [shape = 's32[2]{0}', space=sflag, size = 0x8, scoped, tag = 'scoped memory for tpu_custom_call.1']
    #allocation5 [shape = 's32[2]{0}', space=sflag, size = 0x8, scoped, tag = 'scoped memory for tpu_custom_call.1']
    #allocation6 [shape = 'u8[8192]{0}', space=vmem, size = 0x2000, scoped, tag = 'output window, operand 0']
    %8 = vsyncpa [#allocation4], 0
    %s9 = scalar_lea.sflag [#allocation4], 1
    %10 = vsyncpa %s9, 0
    %11 = vsyncpa [#allocation5], 0
    %s12 = scalar_lea.sflag [#allocation5], 1
    %13 = vsyncpa %s12, 0
    loop: start=0, step=1, limit=4
    $region2: #{tpu_custom_call.1} parent=1 // loop_pre_header
      _
    $region3: #{tpu_custom_call.1} parent=1 // loop_header
      %s15 = sphi 0, %s19
      %p16 = scmp.ge.s32.totalorder %s15, 4
      %s23 = sphi 0, %s23
      %s25 = sphi 0, %s23
      %s26 = sphi 0, %s25
      %s40 = sphi 0, %s26
      %s46 = sphi 0, %s48
      %s49 = sphi 0, %s46
      %s50 = sphi 0, %s49
      %s66 = sphi 0, %s50
      %s72 = sphi 0, %s74
      %s75 = sphi 0, %s72
      %s76 = sphi 0, %s75
      %s92 = sphi 0, %s76
    $region4: #{tpu_custom_call.1} parent=1 // loop_header_branch
      %18 = sbr.rel (%p16) target = $region8
    $region5: #{tpu_custom_call.1} parent=1 // loop_body
      %s20 = ssub.s32 %s15, 1
      %s21 = ssub.s32 %s15, 2
      %s22 = sadd.s32 %s15, 1
      %s24 = sadd.s32 %s23, 1
      %p27 = scmp.eq.s32.totalorder %s15, 1
      %p28 = scmp.ne.s32.totalorder %s23, %s25
      %p29 = scmp.eq.s32.totalorder %s15, 0
      %p30 = por %p28, %p29
      %p31 = scmp.ne.s32.totalorder %s23, %s25
      %p32 = scmp.eq.s32.totalorder %s20, 1
      %p33 = por %p31, %p32
      %p34 = scmp.ne.s32.totalorder %s25, %s26
      %p35 = scmp.eq.s32.totalorder %s20, 0
      %p36 = por %p34, %p35
      %p37 = scmp.ne.s32.totalorder %s25, %s26
      %p38 = scmp.eq.s32.totalorder %s21, 1
      %p39 = por %p37, %p38
      %p41 = scmp.ne.s32.totalorder %s26, %s40
      %p42 = scmp.eq.s32.totalorder %s21, 0
      %p43 = por %p41, %p42
      %s44 = ssub.s32 %s15, %s22
      %p45 = scmp.eq.s32.totalorder %s44, 0
      %s47 = sadd.s32 %s46, 1
      %s48 = scalar_select %p45, %s46, %s47
      %p51 = pneg %p45
      %p52 = scmp.eq.s32.totalorder %s15, 1
      %p53 = por %p51, %p52
      %p54 = scmp.ne.s32.totalorder %s46, %s49
      %p55 = scmp.eq.s32.totalorder %s15, 0
      %p56 = por %p54, %p55
      %p57 = scmp.ne.s32.totalorder %s46, %s49
      %p58 = scmp.eq.s32.totalorder %s20, 1
      %p59 = por %p57, %p58
      %p60 = scmp.ne.s32.totalorder %s49, %s50
      %p61 = scmp.eq.s32.totalorder %s20, 0
      %p62 = por %p60, %p61
      %p63 = scmp.ne.s32.totalorder %s49, %s50
      %p64 = scmp.eq.s32.totalorder %s21, 1
      %p65 = por %p63, %p64
      %p67 = scmp.ne.s32.totalorder %s50, %s66
      %p68 = scmp.eq.s32.totalorder %s21, 0
      %p69 = por %p67, %p68
      %s70 = ssub.s32 %s15, %s22
      %p71 = scmp.eq.s32.totalorder %s70, 0
      %s73 = sadd.s32 %s72, 1
      %s74 = scalar_select %p71, %s72, %s73
      %p77 = pneg %p71
      %p78 = scmp.eq.s32.totalorder %s15, 1
      %p79 = por %p77, %p78
      %p80 = scmp.ne.s32.totalorder %s72, %s75
      %p81 = scmp.eq.s32.totalorder %s15, 0
      %p82 = por %p80, %p81
      %p83 = scmp.ne.s32.totalorder %s72, %s75
      %p84 = scmp.eq.s32.totalorder %s20, 1
      %p85 = por %p83, %p84
      %p86 = scmp.ne.s32.totalorder %s75, %s76
      %p87 = scmp.eq.s32.totalorder %s20, 0
      %p88 = por %p86, %p87
      %p89 = scmp.ne.s32.totalorder %s75, %s76
      %p90 = scmp.eq.s32.totalorder %s21, 1
      %p91 = por %p89, %p90
      %p93 = scmp.ne.s32.totalorder %s76, %s92
      %p94 = scmp.eq.s32.totalorder %s21, 0
      %p95 = por %p93, %p94
      %p96 = scmp.le.s32.totalorder 1, %s15
      %p97 = scmp.lt.s32.totalorder %s15, 3
      %p98 = pnand %p96, %p97
      %p99 = pneg %p98
      // Predicated region
      $region9: #{tpu_custom_call.1} parent=5 // pred_check
        _
      $region10: #{tpu_custom_call.1} parent=5 // pred_check_branch
        %101 = sbr.rel (%p98) target = $region12
      $region11: #{tpu_custom_call.1} parent=5 // pred_region
        %s102 = ssub.s32 %s15, 1
        // Predicated region
        $region13: #{tpu_custom_call.1} parent=11 // pred_check
          %p103 = pneg %p36
        $region14: #{tpu_custom_call.1} parent=11 // pred_check_branch
          %105 = sbr.rel (%p103) target = $region16
        $region15: #{tpu_custom_call.1} parent=11 // pred_region
          _
        $region16: #{tpu_custom_call.1} parent=11 // pred_fallthru
          _
      $region12: #{tpu_custom_call.1} parent=5 // pred_fallthru
        _
      %p106 = scmp.lt.s32.totalorder %s15, 2
      // Predicated region
      $region17: #{tpu_custom_call.1} parent=5 // pred_check
        %p107 = pneg %p106
      $region18: #{tpu_custom_call.1} parent=5 // pred_check_branch
        %109 = sbr.rel (%p107) target = $region20
      $region19: #{tpu_custom_call.1} parent=5 // pred_region
        // Predicated region
        $region21: #{tpu_custom_call.1} parent=19 // pred_check
          %p110 = pneg %p56
        $region22: #{tpu_custom_call.1} parent=19 // pred_check_branch
          %112 = sbr.rel (%p110) target = $region24
        $region23: #{tpu_custom_call.1} parent=19 // pred_region
          %s113 = sand.u32 %s46, 1
          %s114 = scalar_lea.sflag [#allocation4], %s113
          %s115 = sand.u32 %s46, 1
          %s116 = smul.addr %s115, 8
          %s117 = scalar_lea.vmem [#allocation3], %s116
          %s119 = ssub.s32 128, 128
          %120 = vsyncadd %s114, %s119
          %s121 = smul.addr %s15, 2
          %s122 = smul.addr %s121, 64
          %s123 = scalar_lea.hbm %s1, %s122
          %s125 = sshll.u32 %s117, 4
          %s126 = int_to_ptr.vmem [resolvable:$true] %s125
          %128 = dma.hbm_to_vmem [thread:$0]  %s123, 128, %s126, %s114
        $region24: #{tpu_custom_call.1} parent=19 // pred_fallthru
          _
      $region20: #{tpu_custom_call.1} parent=5 // pred_fallthru
        _
      %p129 = scmp.le.s32.totalorder 1, %s15
      %p130 = scmp.lt.s32.totalorder %s15, 3
      %p131 = pnand %p129, %p130
      %p132 = pneg %p131
      // Predicated region
      $region25: #{tpu_custom_call.1} parent=5 // pred_check
        _
      $region26: #{tpu_custom_call.1} parent=5 // pred_check_branch
        %134 = sbr.rel (%p131) target = $region28
      $region27: #{tpu_custom_call.1} parent=5 // pred_region
        %s135 = ssub.s32 %s15, 1
        %s136 = sand.u32 %s49, 1
        %s137 = scalar_lea.sflag [#allocation4], %s136
        %s138 = sand.u32 %s49, 1
        %s139 = smul.addr %s138, 8
        %s140 = scalar_lea.vmem [#allocation3], %s139
        // Predicated region
        $region29: #{tpu_custom_call.1} parent=27 // pred_check
          %p141 = pneg %p62
        $region30: #{tpu_custom_call.1} parent=27 // pred_check_branch
          %143 = sbr.rel (%p141) target = $region32
        $region31: #{tpu_custom_call.1} parent=27 // pred_region
          %144 = dma.done %s137, 128
        $region32: #{tpu_custom_call.1} parent=27 // pred_fallthru
          _
        %p145 = pneg %p36
        %p146 = pneg %p33
        %s147 = sand.u32 %s49, 1
        %s148 = scalar_lea.sflag [#allocation4], %s147
        %s149 = sand.u32 %s49, 1
        %s150 = smul.addr %s149, 8
        %s151 = scalar_lea.vmem [#allocation3], %s150
        %p152 = pneg %p62
        %p153 = pneg %p59
        %p154 = pneg %p88
        %p155 = pneg %p85
        %s156 = sand.u32 %s75, 1
        %s157 = scalar_lea.sflag [#allocation5], %s156
        %s158 = sand.u32 %s75, 1
        %s159 = smul.addr %s158, 8
        %s160 = scalar_lea.vmem [#allocation6], %s159
        %v162 = vld [vmem:[%s140] sm:$0xff]
        %v164 = vcombine.high %v162, %v162
        %v166 = vpack.c.bf16 %v162, %v162
        %v167 = vpack.c.bf16 %v164, %v164
        %168 = vmatprep.subr.bf16.mxu0 %v167
        %169 = vmatpush1.bf16.xpose.msra.mxu0 %v166
        %170 = vmatprep.subr.bf16.mxu0 0
        %171 = vmatpush1.bf16.xpose.msra.mxu0 0
        %172 = vmatprep.subr.bf16.mxu0 0
        %173 = vmatpush1.bf16.xpose.msra.mxu0 0
        %174 = vmatprep.subr.bf16.mxu0 0
        %175 = vmatpush1.bf16.xpose.msra.mxu0 0
        %176 = vmatprep.subr.bf16.mxu0 0
        %177 = vmatpush1.bf16.xpose.msra.mxu0 0
        %178 = vmatprep.subr.bf16.mxu0 0
        %179 = vmatpush1.bf16.xpose.msra.mxu0 0
        %180 = vmatprep.subr.bf16.mxu0 0
        %181 = vmatpush1.bf16.xpose.msra.mxu0 0
        %182 = vmatprep.subr.bf16.mxu0 0
        %183 = vmatpush1.bf16.xpose.msra.mxu0 0
        %184 = vmatprep.subr.bf16.mxu0 0
        %185 = vmatpush1.bf16.xpose.msra.mxu0 0
        %186 = vmatprep.subr.bf16.mxu0 0
        %187 = vmatpush1.bf16.xpose.msra.mxu0 0
        %188 = vmatprep.subr.bf16.mxu0 0
        %189 = vmatpush1.bf16.xpose.msra.mxu0 0
        %190 = vmatprep.subr.bf16.mxu0 0
        %191 = vmatpush1.bf16.xpose.msra.mxu0 0
        %192 = vmatprep.subr.bf16.mxu0 0
        %193 = vmatpush1.bf16.xpose.msra.mxu0 0
        %194 = vmatprep.subr.bf16.mxu0 0
        %195 = vmatpush1.bf16.xpose.msra.mxu0 0
        %196 = vmatprep.subr.bf16.mxu0 0
        %197 = vmatpush1.bf16.xpose.msra.mxu0 0
        %198 = vmatprep.subr.bf16.mxu0 0
        %199 = vmatpush1.bf16.xpose.msra.mxu0 0
        %200 = vmatprep.mubr.bf16.mxu0 %v167
        %201 = vmatmul.mubr.bf16.gmra.mrb[0].mxu0 %v166
        %v202 = vpop.f32.mrb[0].mxu0
        %v203 = vadd.f32 0.0, %v202
        %v204 = vpop.f32.mrb[0].mxu0
        %v205 = vpop.f32.mrb[0].mxu0
        %v206 = vpop.f32.mrb[0].mxu0
        %207 = vdwg.mxu0
        %vm208 = vcmask 27648
        %v209 = vsel %vm208, %v203, inf
        %210 = vmin.xlane.f32.xlu0 %v209
        %v211 = vpop.xlane.xlu0 %210
        %v212 = vsub.f32 %v211, %v203
        %v213 = vmul.f32 %v212, 1.442695
        %v214 = vpow.pop %v213
        %v215 = vsel %vm208, %v214, 0.0
        %216 = vadd.xlane.f32.xlu0 %v215
        %v217 = vpop.xlane.xlu0 %216
        %v218 = vrcp.pop %v217
        %v219 = vmul.f32 %v214, %v218
        %v220 = vpack.c.bf16 %v219, %v219
        %vm221 = vcmask 31744
        %v223 = vsel %vm221, %v220, 0
        %vm225 = vcmask 1041408
        %v227 = vsel %vm225, %v166, 0
        %v230 = vsel %vm225, %v167, 0
        %232 = vmatprep.subr.bf16.mxu0 %v230
        %233 = vmatpush1.bf16.msra.mxu0 %v227
        %234 = vmatprep.subr.bf16.mxu0 0
        %235 = vmatpush1.bf16.msra.mxu0 0
        %236 = vmatprep.subr.bf16.mxu0 0
        %237 = vmatpush1.bf16.msra.mxu0 0
        %238 = vmatprep.subr.bf16.mxu0 0
        %239 = vmatpush1.bf16.msra.mxu0 0
        %240 = vmatprep.subr.bf16.mxu0 0
        %241 = vmatpush1.bf16.msra.mxu0 0
        %242 = vmatprep.subr.bf16.mxu0 0
        %243 = vmatpush1.bf16.msra.mxu0 0
        %244 = vmatprep.subr.bf16.mxu0 0
        %245 = vmatpush1.bf16.msra.mxu0 0
        %246 = vmatprep.subr.bf16.mxu0 0
        %247 = vmatpush1.bf16.msra.mxu0 0
        %248 = vmatprep.subr.bf16.mxu0 0
        %249 = vmatpush1.bf16.msra.mxu0 0
        %250 = vmatprep.subr.bf16.mxu0 0
        %251 = vmatpush1.bf16.msra.mxu0 0
        %252 = vmatprep.subr.bf16.mxu0 0
        %253 = vmatpush1.bf16.msra.mxu0 0
        %254 = vmatprep.subr.bf16.mxu0 0
        %255 = vmatpush1.bf16.msra.mxu0 0
        %256 = vmatprep.subr.bf16.mxu0 0
        %257 = vmatpush1.bf16.msra.mxu0 0
        %258 = vmatprep.subr.bf16.mxu0 0
        %259 = vmatpush1.bf16.msra.mxu0 0
        %260 = vmatprep.subr.bf16.mxu0 0
        %261 = vmatpush1.bf16.msra.mxu0 0
        %262 = vmatprep.subr.bf16.mxu0 0
        %263 = vmatpush1.bf16.msra.mxu0 0
        %264 = vmatprep.mubr.bf16.mxu0 0
        %265 = vmatmul.mubr.bf16.gmra.mrb[0].mxu0 %v223
        %v266 = vpop.f32.mrb[0].mxu0
        %v267 = vadd.f32 0.0, %v266
        %v268 = vpop.f32.mrb[0].mxu0
        %v269 = vadd.f32 0.0, %v268
        %v270 = vpop.f32.mrb[0].mxu0
        %v271 = vpop.f32.mrb[0].mxu0
        %272 = vdwg.mxu0
        %s273 = sld [smem:[#allocation2]]
        %v274 = vstv %s273
        %v275 = vmul.f32 %v274, %v267
        %v276 = vmul.f32 %v274, %v269
        %v277 = vadd.f32 %v275, %v162
        %v278 = vadd.f32 %v276, %v164
        %v281 = vcombine.low %v277, %v278
        %283 = vst [vmem:[%s160] sm:$0xff] %v281
        %s284 = sand.u32 %s75, 1
        %s285 = scalar_lea.sflag [#allocation5], %s284
        %s286 = sand.u32 %s75, 1
        %s287 = smul.addr %s286, 8
        %s288 = scalar_lea.vmem [#allocation6], %s287
        // Predicated region
        $region33: #{tpu_custom_call.1} parent=27 // pred_check
          %p289 = pneg %p85
        $region34: #{tpu_custom_call.1} parent=27 // pred_check_branch
          %291 = sbr.rel (%p289) target = $region36
        $region35: #{tpu_custom_call.1} parent=27 // pred_region
          %s293 = ssub.s32 128, 128
          %294 = vsyncadd %s285, %s293
          %s295 = smul.addr %s20, 2
          %s296 = smul.addr %s295, 64
          %s297 = scalar_lea.hbm %s2, %s296
          %s299 = sshll.u32 %s288, 4
          %s300 = int_to_ptr.vmem [resolvable:$true] %s299
          %302 = dma.vmem_to_hbm [thread:$0]  %s300, 128, %s297, %s285
        $region36: #{tpu_custom_call.1} parent=27 // pred_fallthru
          _
      $region28: #{tpu_custom_call.1} parent=5 // pred_fallthru
        _
      %p303 = scmp.le.s32.totalorder 2, %s15
      // Predicated region
      $region37: #{tpu_custom_call.1} parent=5 // pred_check
        %p304 = pneg %p303
      $region38: #{tpu_custom_call.1} parent=5 // pred_check_branch
        %306 = sbr.rel (%p304) target = $region40
      $region39: #{tpu_custom_call.1} parent=5 // pred_region
        %s307 = ssub.s32 %s15, 2
        // Predicated region
        $region41: #{tpu_custom_call.1} parent=39 // pred_check
          %p308 = pneg %p91
        $region42: #{tpu_custom_call.1} parent=39 // pred_check_branch
          %310 = sbr.rel (%p308) target = $region44
        $region43: #{tpu_custom_call.1} parent=39 // pred_region
          %s311 = sand.u32 %s76, 1
          %s312 = scalar_lea.sflag [#allocation5], %s311
          %s313 = sand.u32 %s76, 1
          %s314 = smul.addr %s313, 8
          %s315 = scalar_lea.vmem [#allocation6], %s314
          %316 = dma.done %s312, 128
        $region44: #{tpu_custom_call.1} parent=39 // pred_fallthru
          _
      $region40: #{tpu_custom_call.1} parent=5 // pred_fallthru
        _
    $region6: #{tpu_custom_call.1} parent=1 // loop_footer
      %s19 = sadd.s32 1, %s15
    $region7: #{tpu_custom_call.1} parent=1 // loop_footer_branch
      %14 = sbr.rel target = $region3
    $region8: #{tpu_custom_call.1} parent=1 // loop_exit
      _
    %317 = vsyncpa [#allocation4], 1
    %s318 = scalar_lea.sflag [#allocation4], 1
    %319 = vsyncpa %s318, 1
    %320 = vsyncpa [#allocation5], 1
    %s321 = scalar_lea.sflag [#allocation5], 1
    %322 = vsyncpa %s321, 1

</llo_original>
